<compile_context>
chip_gen: v6e
topology: v6e:2x2x1
jax: 0.10.0
libtpu: 0.0.40
codegen_flags: <defaults>
</compile_context>

<pallas_src>
import jax
import jax.numpy as jnp
from jax.experimental import pallas as pl
from jax.experimental.pallas import tpu as pltpu


def rawnet_kernel(x_ref, w1a_ref, w1b_ref, b1_ref, w2_ref, b2_ref,
                  w3_ref, b3_ref, out_ref):
    # x_ref: (2, TILE_N) -- batch on the lane axis.
    x0 = x_ref[0:1, :]                                        # (1, TILE_N)
    x1 = x_ref[1:2, :]                                        # (1, TILE_N)

    # Layer 1: depth-2 contraction as two VPU FMAs (outer-product broadcasts),
    # bypassing the MXU entirely.  Columns of w1 arrive pre-split as (H, 1).
    h1 = jnp.tanh(w1a_ref[...] * x0 + w1b_ref[...] * x1
                  + b1_ref[...])                              # (H, TILE_N)

    # Layer 2: H x H matmul on the MXU; output stays lane-dense (H, TILE_N).
    h2 = jnp.tanh(
        jnp.dot(w2_ref[...], h1, preferred_element_type=jnp.float32)
        + b2_ref[...])                                        # (H, TILE_N)

    # Layer 3: 1-wide output as multiply + sublane reduce (XLU), keeping the
    # MXU out of the critical path and producing a lane-dense (1, TILE_N) row.
    h3 = jnp.sum(w3_ref[...] * h2, axis=0, keepdims=True) + b3_ref[...]

    out_ref[...] = jax.nn.sigmoid(h3).astype(out_ref.dtype)   # (1, TILE_N)


def _round_up(x, m):
    return (x + m - 1) // m * m


def rawnet_forward(x, params, *, tile_n=2048):
    """x: (N, 2) float32.  Returns (N, 1) float32 sigmoid outputs."""
    n = x.shape[0]
    w1, b1 = params["w1"], params["b1"]      # (H, 2), (H, 1)
    w2, b2 = params["w2"], params["b2"]      # (H, H), (H, 1)
    w3, b3 = params["w3"], params["b3"]      # (H, 1), (1, 1)

    # Pad the batch to a multiple of the lane tile (padded cols sliced off at
    # the end).  For tiny batches this collapses to a single 128-wide tile.
    tile_n = min(tile_n, _round_up(n, 128))
    num_tiles = pl.cdiv(n, tile_n)
    n_pad = num_tiles * tile_n
    xt = jnp.pad(x.astype(jnp.float32).T, ((0, 0), (0, n_pad - n)))  # (2, n_pad)

    # Pre-split w1 into its two columns so the kernel's layer-1 FMAs need no
    # narrow lane slices (pure layout plumbing, done once outside the kernel).
    w1a = w1[:, 0:1]                          # (H, 1)
    w1b = w1[:, 1:2]                          # (H, 1)

    const = lambda shape: pl.BlockSpec(shape, lambda i: (0, 0))  # VMEM-resident

    out_t = pl.pallas_call(
        rawnet_kernel,
        out_shape=jax.ShapeDtypeStruct((1, n_pad), jnp.float32),
        grid=(num_tiles,),
        in_specs=[
            pl.BlockSpec((2, tile_n), lambda i: (0, i)),   # x tile (batch in lanes)
            const(w1a.shape), const(w1b.shape), const(b1.shape),
            const(w2.shape), const(b2.shape),
            const(w3.shape), const(b3.shape),
        ],
        out_specs=pl.BlockSpec((1, tile_n), lambda i: (0, i)),
        compiler_params=pltpu.CompilerParams(
            dimension_semantics=("parallel",)),            # megacore on v7x
    )(xt, w1a, w1b, b1, w2, b2, w3, b3)

    return out_t[:, :n].T                                   # (N, 1)


def init_params(key, num_hid):
    """Deterministic init mirroring nn.Linear (uniform +/- 1/sqrt(fan_in)).
    Weights are stored in PyTorch (out_features, in_features) layout; biases as
    (out_features, 1) columns for batch-in-lanes broadcasting; w3 as (H, 1)."""
    def linear(key, fan_in, fan_out):
        kw, kb = jax.random.split(key)
        bound = 1.0 / (fan_in ** 0.5)
        w = jax.random.uniform(kw, (fan_out, fan_in), jnp.float32,
                               minval=-bound, maxval=bound)
        b = jax.random.uniform(kb, (fan_out, 1), jnp.float32,
                               minval=-bound, maxval=bound)
        return w, b

    k1, k2, k3 = jax.random.split(key, 3)
    w1, b1 = linear(k1, 2, num_hid)          # (H, 2), (H, 1)
    w2, b2 = linear(k2, num_hid, num_hid)    # (H, H), (H, 1)
    w3, b3 = linear(k3, num_hid, 1)          # (1, H), (1, 1)
    return {"w1": w1, "b1": b1, "w2": w2, "b2": b2,
            "w3": w3.T, "b3": b3}            # store w3 as (H, 1)


def rawnet_reference(x, p):
    """Pure-JAX reference matching the PyTorch forward (row layout)."""
    h1 = jnp.tanh(x @ p["w1"].T + p["b1"][:, 0])
    h2 = jnp.tanh(h1 @ p["w2"].T + p["b2"][:, 0])
    h3 = h2 @ p["w3"] + p["b3"][0]
    return jax.nn.sigmoid(h3)


if __name__ == "__main__":
    key = jax.random.PRNGKey(0)
    k_x, k_p = jax.random.split(key)

    num_hid = 32
    batch = 8
    # Synthetic "spiral"-style 2-D coordinates, shape (batch, 2).
    x = jax.random.normal(k_x, (batch, 2), dtype=jnp.float32)

    params = init_params(k_p, num_hid)

    out = rawnet_forward(x, params)
    out = jax.block_until_ready(out)

    ref = rawnet_reference(x, params)
    assert out.shape == (batch, 1)
    assert jnp.allclose(out, ref, atol=2e-5, rtol=1e-5)

    print("KERNEL_OK")
</pallas_src>

<mosaic_0001>
module attributes {stable_mosaic.version = 11 : i64} {
  func.func @rawnet_kernel(%arg0: i32, %arg1: memref<2x128xf32, #tpu.memory_space<vmem>>, %arg2: memref<32x1xf32, #tpu.memory_space<vmem>>, %arg3: memref<32x1xf32, #tpu.memory_space<vmem>>, %arg4: memref<32x1xf32, #tpu.memory_space<vmem>>, %arg5: memref<32x32xf32, #tpu.memory_space<vmem>>, %arg6: memref<32x1xf32, #tpu.memory_space<vmem>>, %arg7: memref<32x1xf32, #tpu.memory_space<vmem>>, %arg8: memref<1x1xf32, #tpu.memory_space<vmem>>, %arg9: memref<1x128xf32, #tpu.memory_space<vmem>>) attributes {dimension_semantics = [#tpu.dimension_semantics<parallel>], iteration_bounds = array<i64: 1>, scalar_prefetch = 0 : i64, scratch_operands = 0 : i64, tpu.core_type = #tpu.core_type<tc>, window_params = [{transform_indices = @transform_0, window_bounds = array<i64: 2, 128>}, {pipeline_mode = #tpu.pipeline_mode<synchronous>, transform_indices = @transform_1, window_bounds = array<i64: 32, 1>}, {pipeline_mode = #tpu.pipeline_mode<synchronous>, transform_indices = @transform_2, window_bounds = array<i64: 32, 1>}, {pipeline_mode = #tpu.pipeline_mode<synchronous>, transform_indices = @transform_3, window_bounds = array<i64: 32, 1>}, {pipeline_mode = #tpu.pipeline_mode<synchronous>, transform_indices = @transform_4, window_bounds = array<i64: 32, 32>}, {pipeline_mode = #tpu.pipeline_mode<synchronous>, transform_indices = @transform_5, window_bounds = array<i64: 32, 1>}, {pipeline_mode = #tpu.pipeline_mode<synchronous>, transform_indices = @transform_6, window_bounds = array<i64: 32, 1>}, {pipeline_mode = #tpu.pipeline_mode<synchronous>, transform_indices = @transform_7, window_bounds = array<i64: 1, 1>}, {transform_indices = @transform_8, window_bounds = array<i64: 1, 128>}]} {
    %c0 = arith.constant 0 : index
    %c0_0 = arith.constant 0 : index
    %0 = vector.load %arg1[%c0, %c0_0] : memref<2x128xf32, #tpu.memory_space<vmem>>, vector<1x128xf32>
    %c1 = arith.constant 1 : index
    %c0_1 = arith.constant 0 : index
    %1 = vector.load %arg1[%c1, %c0_1] : memref<2x128xf32, #tpu.memory_space<vmem>>, vector<1x128xf32>
    %c0_2 = arith.constant 0 : index
    %c0_3 = arith.constant 0 : index
    %2 = vector.load %arg2[%c0_2, %c0_3] : memref<32x1xf32, #tpu.memory_space<vmem>>, vector<32x1xf32>
    %3 = vector.broadcast %2 : vector<32x1xf32> to vector<32x128xf32>
    %4 = vector.broadcast %0 : vector<1x128xf32> to vector<32x128xf32>
    %5 = arith.mulf %3, %4 : vector<32x128xf32>
    %c0_4 = arith.constant 0 : index
    %c0_5 = arith.constant 0 : index
    %6 = vector.load %arg3[%c0_4, %c0_5] : memref<32x1xf32, #tpu.memory_space<vmem>>, vector<32x1xf32>
    %7 = vector.broadcast %6 : vector<32x1xf32> to vector<32x128xf32>
    %8 = vector.broadcast %1 : vector<1x128xf32> to vector<32x128xf32>
    %9 = arith.mulf %7, %8 : vector<32x128xf32>
    %10 = arith.addf %5, %9 : vector<32x128xf32>
    %c0_6 = arith.constant 0 : index
    %c0_7 = arith.constant 0 : index
    %11 = vector.load %arg4[%c0_6, %c0_7] : memref<32x1xf32, #tpu.memory_space<vmem>>, vector<32x1xf32>
    %12 = vector.broadcast %11 : vector<32x1xf32> to vector<32x128xf32>
    %13 = arith.addf %10, %12 : vector<32x128xf32>
    %14 = math.tanh %13 : vector<32x128xf32>
    %c0_8 = arith.constant 0 : index
    %c0_9 = arith.constant 0 : index
    %15 = vector.load %arg5[%c0_8, %c0_9] : memref<32x32xf32, #tpu.memory_space<vmem>>, vector<32x32xf32>
    %cst = arith.constant dense<0.000000e+00> : vector<32x128xf32>
    %16 = tpu.matmul %15, %14, %cst {dimension_numbers = #tpu.dot_dimension_numbers<[1], [0], [0], [1], [0, 0, 1, 1], [], []>} : vector<32x32xf32>, vector<32x128xf32>, vector<32x128xf32> -> vector<32x128xf32>
    %c0_10 = arith.constant 0 : index
    %c0_11 = arith.constant 0 : index
    %17 = vector.load %arg6[%c0_10, %c0_11] : memref<32x1xf32, #tpu.memory_space<vmem>>, vector<32x1xf32>
    %18 = vector.broadcast %17 : vector<32x1xf32> to vector<32x128xf32>
    %19 = arith.addf %16, %18 : vector<32x128xf32>
    %20 = math.tanh %19 : vector<32x128xf32>
    %c0_12 = arith.constant 0 : index
    %c0_13 = arith.constant 0 : index
    %21 = vector.load %arg7[%c0_12, %c0_13] : memref<32x1xf32, #tpu.memory_space<vmem>>, vector<32x1xf32>
    %22 = vector.broadcast %21 : vector<32x1xf32> to vector<32x128xf32>
    %23 = arith.mulf %22, %20 : vector<32x128xf32>
    %cst_14 = arith.constant dense<0.000000e+00> : vector<128xf32>
    %24 = vector.multi_reduction <add>, %23, %cst_14 [0] : vector<32x128xf32> to vector<128xf32>
    %25 = vector.shape_cast %24 : vector<128xf32> to vector<1x128xf32>
    %c0_15 = arith.constant 0 : index
    %c0_16 = arith.constant 0 : index
    %26 = vector.load %arg8[%c0_15, %c0_16] : memref<1x1xf32, #tpu.memory_space<vmem>>, vector<1x1xf32>
    %27 = vector.broadcast %26 : vector<1x1xf32> to vector<1x128xf32>
    %28 = arith.addf %25, %27 : vector<1x128xf32>
    %29 = arith.negf %28 : vector<1x128xf32>
    %30 = math.exp %29 : vector<1x128xf32>
    %cst_17 = arith.constant 1.000000e+00 : f32
    %31 = vector.broadcast %cst_17 : f32 to vector<1x128xf32>
    %32 = arith.addf %31, %30 : vector<1x128xf32>
    %33 = arith.divf %31, %32 : vector<1x128xf32>
    %c0_18 = arith.constant 0 : index
    %c0_19 = arith.constant 0 : index
    %34 = vector.load %arg9[%c0_18, %c0_19] : memref<1x128xf32, #tpu.memory_space<vmem>>, vector<1x128xf32>
    tpu.vector_store %arg9[%c0_18, %c0_19], %33 {strides = array<i32>} : memref<1x128xf32, #tpu.memory_space<vmem>>, vector<1x128xf32>,
    return
  }
  func.func @transform_0(%arg0: i32) -> (i32, i32) {
    %c0_i32 = arith.constant 0 : i32
    %c0_i32_0 = arith.constant 0 : i32
    return %c0_i32, %arg0 : i32, i32
  }
  func.func @transform_1(%arg0: i32) -> (i32, i32) {
    %c0_i32 = arith.constant 0 : i32
    %c0_i32_0 = arith.constant 0 : i32
    %c0_i32_1 = arith.constant 0 : i32
    return %c0_i32, %c0_i32_0 : i32, i32
  }
  func.func @transform_2(%arg0: i32) -> (i32, i32) {
    %c0_i32 = arith.constant 0 : i32
    %c0_i32_0 = arith.constant 0 : i32
    %c0_i32_1 = arith.constant 0 : i32
    return %c0_i32, %c0_i32_0 : i32, i32
  }
  func.func @transform_3(%arg0: i32) -> (i32, i32) {
    %c0_i32 = arith.constant 0 : i32
    %c0_i32_0 = arith.constant 0 : i32
    %c0_i32_1 = arith.constant 0 : i32
    return %c0_i32, %c0_i32_0 : i32, i32
  }
  func.func @transform_4(%arg0: i32) -> (i32, i32) {
    %c0_i32 = arith.constant 0 : i32
    %c0_i32_0 = arith.constant 0 : i32
    %c0_i32_1 = arith.constant 0 : i32
    return %c0_i32, %c0_i32_0 : i32, i32
  }
  func.func @transform_5(%arg0: i32) -> (i32, i32) {
    %c0_i32 = arith.constant 0 : i32
    %c0_i32_0 = arith.constant 0 : i32
    %c0_i32_1 = arith.constant 0 : i32
    return %c0_i32, %c0_i32_0 : i32, i32
  }
  func.func @transform_6(%arg0: i32) -> (i32, i32) {
    %c0_i32 = arith.constant 0 : i32
    %c0_i32_0 = arith.constant 0 : i32
    %c0_i32_1 = arith.constant 0 : i32
    return %c0_i32, %c0_i32_0 : i32, i32
  }
  func.func @transform_7(%arg0: i32) -> (i32, i32) {
    %c0_i32 = arith.constant 0 : i32
    %c0_i32_0 = arith.constant 0 : i32
    %c0_i32_1 = arith.constant 0 : i32
    return %c0_i32, %c0_i32_0 : i32, i32
  }
  func.func @transform_8(%arg0: i32) -> (i32, i32) {
    %c0_i32 = arith.constant 0 : i32
    %c0_i32_0 = arith.constant 0 : i32
    return %c0_i32, %arg0 : i32, i32
  }
}

</mosaic_0001>

<llo_original>
// kernel: tpu_custom_call.1
$region0: #{tpu_custom_call.1}
  #allocation0 [shape = 'u32[]', space=smem, size = 0x4, offset = 0x4, fixed_abs, tag = 'smem constant byte address 0x4 - core index']
  #allocation1 [shape = 'u32[144,128]{1,0:T(1,128)}', space=vmem, size = 0x12000, scoped, tag = 'internal scratch']
  #allocation2 [shape = 'f32[1,1]{1,0:T(1,128)S(1)}', space=vmem, size = 0x200, scoped, tag = 'scoped memory for tpu_custom_call.1']
  %s0 = inlined_call_operand.vmem [shape: f32[2,128], index: 0, kind: input, shape index: {}]
  %s1 = inlined_call_operand.vmem [shape: f32[32,1], index: 1, kind: input, shape index: {}]
  %s2 = inlined_call_operand.vmem [shape: f32[32,1], index: 2, kind: input, shape index: {}]
  %s3 = inlined_call_operand.vmem [shape: f32[32,1], index: 3, kind: input, shape index: {}]
  %s4 = inlined_call_operand.vmem [shape: f32[32,32], index: 4, kind: input, shape index: {}]
  %s5 = inlined_call_operand.vmem [shape: f32[32,1], index: 5, kind: input, shape index: {}]
  %s6 = inlined_call_operand.vmem [shape: f32[32,1], index: 6, kind: input, shape index: {}]
  %s7 = inlined_call_operand.<no memory space> [shape: f32[1,1], index: 7, kind: input, shape index: {}]
  %s8 = inlined_call_operand.hbm [shape: f32[1,128], index: 8, kind: output, shape index: {}]
  %s9 = sld [smem:[#allocation0]]
  $region42: #{tpu_custom_call.1} parent=0
    _
  %s11 = ssub.s32 1, %s9
  %s12 = scalar_select 0, %s11, %s9
  %v13 = vstv %s7
  %14 = vst [vmem:[#allocation2] sm:$0x1] %v13
  $region1: #{tpu_custom_call.1} parent=0
    #allocation3 [shape = 'u8[512]{0}', space=vmem, size = 0x400, scoped, tag = 'output window, operand 0, single buffered']
    #allocation4 [shape = 's32[1]{0}', space=sflag, size = 0x4, scoped, tag = 'scoped memory for tpu_custom_call.1']
    %15 = vsyncpa [#allocation4], 0
    // Predicated region
    $region2: #{tpu_custom_call.1} parent=1 // pred_check
      _
    $region3: #{tpu_custom_call.1} parent=1 // pred_check_branch
      %17 = sbr.rel (0) target = $region5
    $region4: #{tpu_custom_call.1} parent=1 // pred_region
      _
    $region5: #{tpu_custom_call.1} parent=1 // pred_fallthru
      _
    // Predicated region
    $region6: #{tpu_custom_call.1} parent=1 // pred_check
      _
    $region7: #{tpu_custom_call.1} parent=1 // pred_check_branch
      %19 = sbr.rel (0) target = $region9
    $region8: #{tpu_custom_call.1} parent=1 // pred_region
      _
    $region9: #{tpu_custom_call.1} parent=1 // pred_fallthru
      _
    // Predicated region
    $region10: #{tpu_custom_call.1} parent=1 // pred_check
      _
    $region11: #{tpu_custom_call.1} parent=1 // pred_check_branch
      %21 = sbr.rel (0) target = $region13
    $region12: #{tpu_custom_call.1} parent=1 // pred_region
      _
    $region13: #{tpu_custom_call.1} parent=1 // pred_fallthru
      _
    // Predicated region
    $region14: #{tpu_custom_call.1} parent=1 // pred_check
      _
    $region15: #{tpu_custom_call.1} parent=1 // pred_check_branch
      %23 = sbr.rel (0) target = $region17
    $region16: #{tpu_custom_call.1} parent=1 // pred_region
      _
    $region17: #{tpu_custom_call.1} parent=1 // pred_fallthru
      _
    // Predicated region
    $region18: #{tpu_custom_call.1} parent=1 // pred_check
      _
    $region19: #{tpu_custom_call.1} parent=1 // pred_check_branch
      %25 = sbr.rel (0) target = $region21
    $region20: #{tpu_custom_call.1} parent=1 // pred_region
      _
    $region21: #{tpu_custom_call.1} parent=1 // pred_fallthru
      _
    // Predicated region
    $region22: #{tpu_custom_call.1} parent=1 // pred_check
      _
    $region23: #{tpu_custom_call.1} parent=1 // pred_check_branch
      %27 = sbr.rel (0) target = $region25
    $region24: #{tpu_custom_call.1} parent=1 // pred_region
      _
    $region25: #{tpu_custom_call.1} parent=1 // pred_fallthru
      _
    // Predicated region
    $region26: #{tpu_custom_call.1} parent=1 // pred_check
      _
    $region27: #{tpu_custom_call.1} parent=1 // pred_check_branch
      %29 = sbr.rel (0) target = $region29
    $region28: #{tpu_custom_call.1} parent=1 // pred_region
      _
    $region29: #{tpu_custom_call.1} parent=1 // pred_fallthru
      _
    // Predicated region
    $region30: #{tpu_custom_call.1} parent=1 // pred_check
      _
    $region31: #{tpu_custom_call.1} parent=1 // pred_check_branch
      %31 = sbr.rel (0) target = $region33
    $region32: #{tpu_custom_call.1} parent=1 // pred_region
      _
    $region33: #{tpu_custom_call.1} parent=1 // pred_fallthru
      _
    %v32 = vld [vmem:[%s0] sm:$0x1]
    %v33 = vld [vmem:[%s0 + $0x1] sm:$0x1]
    %v34 = vld [vmem:[%s1] sm:$0xff]
    %v35 = vld [vmem:[%s1 + $0x8] sm:$0xff]
    %v36 = vld [vmem:[%s1 + $0x10] sm:$0xff]
    %v37 = vld [vmem:[%s1 + $0x18] sm:$0xff]
    %39 = vset.pattern.permute.xlu0 0
    %40 = vperm.xlu0 %39, %v34
    %v41 = vpop.permute.xlu0 %40
    %44 = vset.pattern.permute.xlu0 0
    %45 = vperm.xlu0 %44, %v35
    %v46 = vpop.permute.xlu0 %45
    %49 = vset.pattern.permute.xlu0 0
    %50 = vperm.xlu0 %49, %v36
    %v51 = vpop.permute.xlu0 %50
    %54 = vset.pattern.permute.xlu0 0
    %55 = vperm.xlu0 %54, %v37
    %v56 = vpop.permute.xlu0 %55
    %v58 = vlaneseq
    %v59 = vshrl.u32 %v58, 7
    %v60 = vsub.s32 0, %v59
    %v61 = vrot.slane %v32, %v60
    %v62 = vmul.f32 %v41, %v61
    %v63 = vmul.f32 %v46, %v61
    %v64 = vmul.f32 %v51, %v61
    %v65 = vmul.f32 %v56, %v61
    %v66 = vld [vmem:[%s2] sm:$0xff]
    %v67 = vld [vmem:[%s2 + $0x8] sm:$0xff]
    %v68 = vld [vmem:[%s2 + $0x10] sm:$0xff]
    %v69 = vld [vmem:[%s2 + $0x18] sm:$0xff]
    %71 = vset.pattern.permute.xlu0 0
    %72 = vperm.xlu0 %71, %v66
    %v73 = vpop.permute.xlu0 %72
    %76 = vset.pattern.permute.xlu0 0
    %77 = vperm.xlu0 %76, %v67
    %v78 = vpop.permute.xlu0 %77
    %81 = vset.pattern.permute.xlu0 0
    %82 = vperm.xlu0 %81, %v68
    %v83 = vpop.permute.xlu0 %82
    %86 = vset.pattern.permute.xlu0 0
    %87 = vperm.xlu0 %86, %v69
    %v88 = vpop.permute.xlu0 %87
    %v90 = vlaneseq
    %v91 = vshrl.u32 %v90, 7
    %v92 = vsub.s32 0, %v91
    %v93 = vrot.slane %v33, %v92
    %v94 = vmul.f32 %v73, %v93
    %v95 = vmul.f32 %v78, %v93
    %v96 = vmul.f32 %v83, %v93
    %v97 = vmul.f32 %v88, %v93
    %v98 = vadd.f32 %v62, %v94
    %v99 = vadd.f32 %v63, %v95
    %v100 = vadd.f32 %v64, %v96
    %v101 = vadd.f32 %v65, %v97
    %v102 = vld [vmem:[%s3] sm:$0xff]
    %v103 = vld [vmem:[%s3 + $0x8] sm:$0xff]
    %v104 = vld [vmem:[%s3 + $0x10] sm:$0xff]
    %v105 = vld [vmem:[%s3 + $0x18] sm:$0xff]
    %107 = vset.pattern.permute.xlu0 0
    %108 = vperm.xlu0 %107, %v102
    %v109 = vpop.permute.xlu0 %108
    %112 = vset.pattern.permute.xlu0 0
    %113 = vperm.xlu0 %112, %v103
    %v114 = vpop.permute.xlu0 %113
    %117 = vset.pattern.permute.xlu0 0
    %118 = vperm.xlu0 %117, %v104
    %v119 = vpop.permute.xlu0 %118
    %122 = vset.pattern.permute.xlu0 0
    %123 = vperm.xlu0 %122, %v105
    %v124 = vpop.permute.xlu0 %123
    %v126 = vadd.f32 %v98, %v109
    %v127 = vadd.f32 %v99, %v114
    %v128 = vadd.f32 %v100, %v119
    %v129 = vadd.f32 %v101, %v124
    %v130 = vtanh.pop %v126
    %v131 = vtanh.pop %v127
    %v132 = vtanh.pop %v128
    %v133 = vtanh.pop %v129
    %v134 = vld [vmem:[%s4] sm:$0xff]
    %v135 = vld [vmem:[%s4 + $0x8] sm:$0xff]
    %v136 = vld [vmem:[%s4 + $0x10] sm:$0xff]
    %v137 = vld [vmem:[%s4 + $0x18] sm:$0xff]
    %v138 = vld [vmem:[%s5] sm:$0xff]
    %v139 = vld [vmem:[%s5 + $0x8] sm:$0xff]
    %v140 = vld [vmem:[%s5 + $0x10] sm:$0xff]
    %v141 = vld [vmem:[%s5 + $0x18] sm:$0xff]
    %143 = vset.pattern.permute.xlu0 0
    %144 = vperm.xlu0 %143, %v138
    %v145 = vpop.permute.xlu0 %144
    %148 = vset.pattern.permute.xlu0 0
    %149 = vperm.xlu0 %148, %v139
    %v150 = vpop.permute.xlu0 %149
    %153 = vset.pattern.permute.xlu0 0
    %154 = vperm.xlu0 %153, %v140
    %v155 = vpop.permute.xlu0 %154
    %158 = vset.pattern.permute.xlu0 0
    %159 = vperm.xlu0 %158, %v141
    %v160 = vpop.permute.xlu0 %159
    %vm162 = vcmask 261120
    %v164 = vsel %vm162, %v134, 0
    %v167 = vsel %vm162, %v135, 0
    %v170 = vsel %vm162, %v136, 0
    %v173 = vsel %vm162, %v137, 0
    %175 = vmatprep.subr.mxu0 0.0
    %176 = vmatpush1.msra.mxu0 0.0
    %177 = vmatprep.subr.mxu0 0.0
    %178 = vmatpush1.msra.mxu0 0.0
    %179 = vmatprep.subr.mxu0 0.0
    %180 = vmatpush1.msra.mxu0 0.0
    %181 = vmatprep.subr.mxu0 0.0
    %182 = vmatpush1.msra.mxu0 0.0
    %183 = vmatprep.subr.mxu0 0.0
    %184 = vmatpush1.msra.mxu0 0.0
    %185 = vmatprep.subr.mxu0 0.0
    %186 = vmatpush1.msra.mxu0 0.0
    %187 = vmatprep.subr.mxu0 0.0
    %188 = vmatpush1.msra.mxu0 0.0
    %189 = vmatprep.subr.mxu0 0.0
    %190 = vmatpush1.msra.mxu0 0.0
    %191 = vmatprep.subr.mxu0 0.0
    %192 = vmatpush1.msra.mxu0 0.0
    %193 = vmatprep.subr.mxu0 0.0
    %194 = vmatpush1.msra.mxu0 0.0
    %195 = vmatprep.subr.mxu0 0.0
    %196 = vmatpush1.msra.mxu0 0.0
    %197 = vmatprep.subr.mxu0 0.0
    %198 = vmatpush1.msra.mxu0 0.0
    %199 = vmatprep.subr.mxu0 0.0
    %200 = vmatpush1.msra.mxu0 %v133
    %201 = vmatprep.subr.mxu0 0.0
    %202 = vmatpush1.msra.mxu0 %v132
    %203 = vmatprep.subr.mxu0 0.0
    %204 = vmatpush1.msra.mxu0 %v131
    %205 = vmatprep.subr.mxu0 0.0
    %206 = vmatpush1.msra.mxu0 %v130
    %207 = vmatprep.subr.mxu0 0.0
    %208 = vmatpush2.msra.mxu0 0.0
    %209 = vmatprep.subr.mxu0 0.0
    %210 = vmatpush2.msra.mxu0 0.0
    %211 = vmatprep.subr.mxu0 0.0
    %212 = vmatpush2.msra.mxu0 0.0
    %213 = vmatprep.subr.mxu0 0.0
    %214 = vmatpush2.msra.mxu0 0.0
    %215 = vmatprep.subr.mxu0 0.0
    %216 = vmatpush2.msra.mxu0 0.0
    %217 = vmatprep.subr.mxu0 0.0
    %218 = vmatpush2.msra.mxu0 0.0
    %219 = vmatprep.subr.mxu0 0.0
    %220 = vmatpush2.msra.mxu0 0.0
    %221 = vmatprep.subr.mxu0 0.0
    %222 = vmatpush2.msra.mxu0 0.0
    %223 = vmatprep.subr.mxu0 0.0
    %224 = vmatpush2.msra.mxu0 0.0
    %225 = vmatprep.subr.mxu0 0.0
    %226 = vmatpush2.msra.mxu0 0.0
    %227 = vmatprep.subr.mxu0 0.0
    %228 = vmatpush2.msra.mxu0 0.0
    %229 = vmatprep.subr.mxu0 0.0
    %230 = vmatpush2.msra.mxu0 0.0
    %231 = vmatprep.subr.mxu0 0.0
    %232 = vmatpush2.msra.mxu0 0.0
    %233 = vmatprep.subr.mxu0 0.0
    %234 = vmatpush2.msra.mxu0 0.0
    %235 = vmatprep.subr.mxu0 0.0
    %236 = vmatpush2.msra.mxu0 0.0
    %237 = vmatprep.subr.mxu0 0.0
    %238 = vmatpush2.msra.mxu0 0.0
    %239 = vmatprep.mubr.f32.mxu0 0.0
    %240 = vmatmul.mubr.f32.gmra.mxu0 %v164
    %v241 = vpop.f32.mrf.mxu0
    %v242 = vadd.f32 %v145, %v241
    %v243 = vpop.f32.mrf.mxu0
    %244 = vmatprep.mubr.f32.mxu0 0.0
    %245 = vmatmul.mubr.f32.gmra.mxu0 %v167
    %v246 = vpop.f32.mrf.mxu0
    %v247 = vadd.f32 %v150, %v246
    %v248 = vpop.f32.mrf.mxu0
    %249 = vmatprep.mubr.f32.mxu0 0.0
    %250 = vmatmul.mubr.f32.gmra.mxu0 %v170
    %v251 = vpop.f32.mrf.mxu0
    %v252 = vadd.f32 %v155, %v251
    %v253 = vpop.f32.mrf.mxu0
    %254 = vmatprep.mubr.f32.mxu0 0.0
    %255 = vmatmul.mubr.f32.gmra.mxu0 %v173
    %v256 = vpop.f32.mrf.mxu0
    %v257 = vadd.f32 %v160, %v256
    %v258 = vpop.f32.mrf.mxu0
    %259 = vdwg.mxu0
    %v260 = vtanh.pop %v242
    %v261 = vtanh.pop %v247
    %v262 = vtanh.pop %v252
    %v263 = vtanh.pop %v257
    %v264 = vld [vmem:[%s6] sm:$0xff]
    %v265 = vld [vmem:[%s6 + $0x8] sm:$0xff]
    %v266 = vld [vmem:[%s6 + $0x10] sm:$0xff]
    %v267 = vld [vmem:[%s6 + $0x18] sm:$0xff]
    %269 = vset.pattern.permute.xlu0 0
    %270 = vperm.xlu0 %269, %v264
    %v271 = vpop.permute.xlu0 %270
    %274 = vset.pattern.permute.xlu0 0
    %275 = vperm.xlu0 %274, %v265
    %v276 = vpop.permute.xlu0 %275
    %279 = vset.pattern.permute.xlu0 0
    %280 = vperm.xlu0 %279, %v266
    %v281 = vpop.permute.xlu0 %280
    %284 = vset.pattern.permute.xlu0 0
    %285 = vperm.xlu0 %284, %v267
    %v286 = vpop.permute.xlu0 %285
    %v288 = vmul.f32 %v271, %v260
    %v289 = vmul.f32 %v276, %v261
    %v290 = vmul.f32 %v281, %v262
    %v291 = vmul.f32 %v286, %v263
    %v292 = vadd.f32 %v288, %v289
    %v293 = vadd.f32 %v292, %v290
    %v294 = vadd.f32 %v293, %v291
    %v295 = vrot.slane %v294, 4
    %v296 = vadd.f32 %v294, %v295
    %v297 = vrot.slane %v296, 2
    %v298 = vadd.f32 %v296, %v297
    %v299 = vrot.slane %v298, 1
    %v300 = vadd.f32 %v298, %v299
    %v301 = vld [vmem:[#allocation2] sm:$0x1]
    %303 = vset.pattern.permute.xlu0 0
    %304 = vperm.xlu0 %303, %v301
    %v305 = vpop.permute.xlu0 %304
    %v307 = vlaneseq
    %v308 = vshrl.u32 %v307, 7
    %v309 = vsub.s32 0, %v308
    %v310 = vrot.slane %v305, %v309
    %v311 = vadd.f32 %v300, %v310
    %v312 = vxor.u32 %v311, 2147483648
    %v313 = vmul.f32 %v312, 1.442695
    %v314 = vpow.pop %v313
    %v315 = vadd.f32 %v314, 1.0
    %v316 = vrcp.pop %v315
    %v317 = vmul.f32 1.0, %v316
    %318 = vst [vmem:[#allocation3] sm:$0x1] %v317
    // Predicated region
    $region34: #{tpu_custom_call.1} parent=1 // pred_check
      _
    $region35: #{tpu_custom_call.1} parent=1 // pred_check_branch
      %320 = sbr.rel (0) target = $region37
    $region36: #{tpu_custom_call.1} parent=1 // pred_region
      %s322 = ssub.s32 16, 16
      %323 = vsyncadd [#allocation4], %s322
      %s325 = sshll.u32 [#allocation3], 4
      %s326 = int_to_ptr.vmem [resolvable:$true] %s325
      %328 = dma.vmem_to_hbm [thread:$0]  %s326, 16, %s8, [#allocation4]
    $region37: #{tpu_custom_call.1} parent=1 // pred_fallthru
      _
    // Predicated region
    $region38: #{tpu_custom_call.1} parent=1 // pred_check
      _
    $region39: #{tpu_custom_call.1} parent=1 // pred_check_branch
      %330 = sbr.rel (0) target = $region41
    $region40: #{tpu_custom_call.1} parent=1 // pred_region
      %331 = dma.done [#allocation4], 16
    $region41: #{tpu_custom_call.1} parent=1 // pred_fallthru
      _
    %332 = vsyncpa [#allocation4], 1

</llo_original>
